<compile_context>
chip_gen: v7x
topology: tpu7x:2x2x1
jax: 0.10.0
libtpu: 0.0.40
codegen_flags: <defaults>
</compile_context>

<pallas_src>
import jax
import jax.numpy as jnp
from jax.experimental import pallas as pl
from jax.experimental.pallas import tpu as pltpu

EPS = 1e-6
_LANE = 128


def _layernorm_kernel(x_ref, gamma_ref, beta_ref, mask_ref, o_ref):
    x = x_ref[...].astype(jnp.float32)                        # (TB, D)
    d = x.shape[-1]

    # mean over last dim (== dim 1 for 2-D input)
    mean = jnp.mean(x, axis=-1, keepdims=True)                # (TB, 1)
    centered = x - mean

    # torch.var default is unbiased (ddof=1).  (D == 1 yields inf/nan, same as torch.)
    var = jnp.sum(centered * centered, axis=-1, keepdims=True) / (d - 1)
    std = jnp.sqrt(var + EPS)                                 # (TB, 1)

    mask = mask_ref[...].astype(jnp.float32)                  # (TB, 1)
    # Exact per-row scale: (TB, 1) divide is negligible and fully hidden under DMA.
    rowscale = mask / (std + EPS)                             # fold mask into the scale

    gamma = gamma_ref[...].astype(jnp.float32)                # (1, D)
    beta = beta_ref[...].astype(jnp.float32)                  # (1, D)

    # (gamma*(x-mean)/(std+eps) + beta) * mask
    #   == gamma * (x-mean) * (mask/(std+eps)) + beta * mask
    out = gamma * (centered * rowscale) + beta * mask         # (TB, D)
    o_ref[...] = out.astype(o_ref.dtype)


def _sublane(itemsize):
    # Native sublane packing: f32 -> 8, bf16 -> 16, int8/fp8 -> 32.
    return max(8, 32 // max(1, itemsize))


def _default_block_b(B, D, itemsize):
    """Row-tile size: ~4 MiB of x per grid step, dtype-aware sublane multiple,
    capped by B and by the >=2-grid-steps guard (v7x megacore)."""
    sub = _sublane(itemsize)
    d_pad = max(_LANE, ((D + _LANE - 1) // _LANE) * _LANE)
    target_bytes = 4 << 20                               # ~4 MiB of x per step
    bb = max(sub, target_bytes // (d_pad * itemsize))
    bb = (bb // sub) * sub
    b_pad = ((B + sub - 1) // sub) * sub
    bb = min(bb, b_pad)
    # Guarantee >= 2 grid steps when possible so v7x's 2nd TensorCore gets work.
    if B >= 2 * sub:
        half = (((B + 1) // 2 + sub - 1) // sub) * sub
        bb = min(bb, half)
    return max(sub, bb)


def _vmem_limit_bytes(block_b, D, itemsize):
    """Explicit scoped-VMEM request covering double-buffered x/out/mask tiles,
    the lane-padded mask, in-kernel f32 temporaries, gamma/beta and headroom."""
    d_pad = max(_LANE, ((D + _LANE - 1) // _LANE) * _LANE)
    x_tile = block_b * d_pad * itemsize                   # x / out DMA tiles
    mask_tile = block_b * _LANE * itemsize                # (bb, 1) pads to 128 lanes
    f32_tile = block_b * d_pad * 4                        # in-kernel f32 temporaries
    gb_tile = 8 * d_pad * 4                               # gamma / beta (sublane padded)
    need = 2 * (2 * x_tile + mask_tile) + 3 * f32_tile + 4 * gb_tile + (2 << 20)
    # 48 MiB is inside v7x's 64 MiB physical VMEM and v5e/v6e's 128 MiB.
    return int(min(max(need, 16 << 20), 48 << 20))


def layernorm(x, gamma, beta, mask, *, block_b=None):
    """x: (B, D), gamma/beta: (D,), mask: (B,). Returns (B, D)."""
    B, D = x.shape
    itemsize = x.dtype.itemsize
    sub = _sublane(itemsize)

    if block_b is None:
        block_b = _default_block_b(B, D, itemsize)
    block_b = max(sub, (block_b // sub) * sub)            # keep sublane-aligned blocks

    gamma2 = gamma.reshape(1, D)
    beta2 = beta.reshape(1, D)
    mask2 = mask.reshape(B, 1).astype(x.dtype)

    grid = (pl.cdiv(B, block_b),)
    return pl.pallas_call(
        _layernorm_kernel,
        out_shape=jax.ShapeDtypeStruct((B, D), x.dtype),
        grid_spec=pl.GridSpec(
            grid=grid,
            in_specs=[
                pl.BlockSpec((block_b, D), lambda i: (i, 0)),   # x
                pl.BlockSpec((1, D), lambda i: (0, 0)),         # gamma (loop-invariant)
                pl.BlockSpec((1, D), lambda i: (0, 0)),         # beta  (loop-invariant)
                pl.BlockSpec((block_b, 1), lambda i: (i, 0)),   # mask  (per-row)
            ],
            out_specs=pl.BlockSpec((block_b, D), lambda i: (i, 0)),
        ),
        compiler_params=pltpu.CompilerParams(
            dimension_semantics=("parallel",),
            vmem_limit_bytes=_vmem_limit_bytes(block_b, D, itemsize),
        ),
    )(x, gamma2, beta2, mask2)


def _reference(x, gamma, beta, mask):
    # Pure-JAX mirror of the PyTorch forward for verification.
    mean = jnp.mean(x, axis=-1, keepdims=True)
    var = jnp.var(x, axis=1, keepdims=True, ddof=1)
    std = jnp.sqrt(var + EPS)
    out = gamma * (x - mean) / (std + EPS) + beta
    return out * mask[:, None]


if __name__ == "__main__":
    key = jax.random.PRNGKey(0)
    kx, km, k2x, k2m = jax.random.split(key, 4)

    # --- main check: lane-dense D (multiple of 128), auto block_b (>=2-step grid) ---
    B, D = 64, 128
    x = jax.random.normal(kx, (B, D), dtype=jnp.float32)
    mask = (jax.random.uniform(km, (B,)) > 0.3).astype(jnp.float32)
    gamma = jnp.linspace(0.5, 1.5, D, dtype=jnp.float32)
    beta = jnp.linspace(-0.2, 0.2, D, dtype=jnp.float32)

    out = layernorm(x, gamma, beta, mask)                 # auto block_b -> 2-step grid
    out = jax.block_until_ready(out)
    ref = _reference(x, gamma, beta, mask)
    assert out.shape == (B, D)
    assert jnp.allclose(out, ref, atol=1e-5, rtol=1e-5), "mismatch vs reference (D=128)"

    # --- secondary check: small D and a partial last row-block (B=24, block_b=16) ---
    B2, D2 = 24, 32
    x2 = jax.random.normal(k2x, (B2, D2), dtype=jnp.float32)
    mask2 = (jax.random.uniform(k2m, (B2,)) > 0.3).astype(jnp.float32)
    gamma2 = jnp.linspace(0.8, 1.2, D2, dtype=jnp.float32)
    beta2 = jnp.linspace(-0.1, 0.1, D2, dtype=jnp.float32)

    out2 = layernorm(x2, gamma2, beta2, mask2, block_b=16)
    out2 = jax.block_until_ready(out2)
    ref2 = _reference(x2, gamma2, beta2, mask2)
    assert out2.shape == (B2, D2)
    assert jnp.allclose(out2, ref2, atol=1e-5, rtol=1e-5), "mismatch vs reference (D=32)"

    print("KERNEL_OK")
</pallas_src>

<mosaic_0001>
module attributes {stable_mosaic.version = 11 : i64} {
  func.func @_layernorm_kernel(%arg0: i32, %arg1: memref<32x128xf32, #tpu.memory_space<vmem>>, %arg2: memref<1x128xf32, #tpu.memory_space<vmem>>, %arg3: memref<1x128xf32, #tpu.memory_space<vmem>>, %arg4: memref<32x1xf32, #tpu.memory_space<vmem>>, %arg5: memref<32x128xf32, #tpu.memory_space<vmem>>) attributes {dimension_semantics = [#tpu.dimension_semantics<parallel>], iteration_bounds = array<i64: 2>, scalar_prefetch = 0 : i64, scratch_operands = 0 : i64, tpu.core_type = #tpu.core_type<tc>, window_params = [{transform_indices = @transform_0, window_bounds = array<i64: 32, 128>}, {pipeline_mode = #tpu.pipeline_mode<synchronous>, transform_indices = @transform_1, window_bounds = array<i64: 1, 128>}, {pipeline_mode = #tpu.pipeline_mode<synchronous>, transform_indices = @transform_2, window_bounds = array<i64: 1, 128>}, {transform_indices = @transform_3, window_bounds = array<i64: 32, 1>}, {transform_indices = @transform_4, window_bounds = array<i64: 32, 128>}]} {
    %c0 = arith.constant 0 : index
    %c0_0 = arith.constant 0 : index
    %0 = vector.load %arg1[%c0, %c0_0] : memref<32x128xf32, #tpu.memory_space<vmem>>, vector<32x128xf32>
    %cst = arith.constant dense<0.000000e+00> : vector<32xf32>
    %1 = vector.multi_reduction <add>, %0, %cst [1] : vector<32x128xf32> to vector<32xf32>
    %2 = vector.shape_cast %1 : vector<32xf32> to vector<32x1xf32>
    %cst_1 = arith.constant 1.280000e+02 : f32
    %3 = vector.broadcast %cst_1 : f32 to vector<32x1xf32>
    %4 = arith.divf %2, %3 : vector<32x1xf32>
    %5 = vector.broadcast %4 : vector<32x1xf32> to vector<32x128xf32>
    %6 = arith.subf %0, %5 : vector<32x128xf32>
    %7 = arith.mulf %6, %6 : vector<32x128xf32>
    %cst_2 = arith.constant dense<0.000000e+00> : vector<32xf32>
    %8 = vector.multi_reduction <add>, %7, %cst_2 [1] : vector<32x128xf32> to vector<32xf32>
    %9 = vector.shape_cast %8 : vector<32xf32> to vector<32x1xf32>
    %cst_3 = arith.constant 1.270000e+02 : f32
    %10 = vector.broadcast %cst_3 : f32 to vector<32x1xf32>
    %11 = arith.divf %9, %10 : vector<32x1xf32>
    %cst_4 = arith.constant 9.99999997E-7 : f32
    %12 = vector.broadcast %cst_4 : f32 to vector<32x1xf32>
    %13 = arith.addf %11, %12 : vector<32x1xf32>
    %14 = math.sqrt %13 : vector<32x1xf32>
    %c0_5 = arith.constant 0 : index
    %c0_6 = arith.constant 0 : index
    %15 = vector.load %arg4[%c0_5, %c0_6] : memref<32x1xf32, #tpu.memory_space<vmem>>, vector<32x1xf32>
    %cst_7 = arith.constant 9.99999997E-7 : f32
    %16 = vector.broadcast %cst_7 : f32 to vector<32x1xf32>
    %17 = arith.addf %14, %16 : vector<32x1xf32>
    %18 = arith.divf %15, %17 : vector<32x1xf32>
    %c0_8 = arith.constant 0 : index
    %c0_9 = arith.constant 0 : index
    %19 = vector.load %arg2[%c0_8, %c0_9] : memref<1x128xf32, #tpu.memory_space<vmem>>, vector<1x128xf32>
    %c0_10 = arith.constant 0 : index
    %c0_11 = arith.constant 0 : index
    %20 = vector.load %arg3[%c0_10, %c0_11] : memref<1x128xf32, #tpu.memory_space<vmem>>, vector<1x128xf32>
    %21 = vector.broadcast %18 : vector<32x1xf32> to vector<32x128xf32>
    %22 = arith.mulf %6, %21 : vector<32x128xf32>
    %23 = vector.broadcast %19 : vector<1x128xf32> to vector<32x128xf32>
    %24 = arith.mulf %23, %22 : vector<32x128xf32>
    %25 = vector.broadcast %20 : vector<1x128xf32> to vector<32x128xf32>
    %26 = vector.broadcast %15 : vector<32x1xf32> to vector<32x128xf32>
    %27 = arith.mulf %25, %26 : vector<32x128xf32>
    %28 = arith.addf %24, %27 : vector<32x128xf32>
    %c0_12 = arith.constant 0 : index
    %c0_13 = arith.constant 0 : index
    %29 = vector.load %arg5[%c0_12, %c0_13] : memref<32x128xf32, #tpu.memory_space<vmem>>, vector<32x128xf32>
    tpu.vector_store %arg5[%c0_12, %c0_13], %28 {strides = array<i32>} : memref<32x128xf32, #tpu.memory_space<vmem>>, vector<32x128xf32>,
    return
  }
  func.func @transform_0(%arg0: i32) -> (i32, i32) {
    %c0_i32 = arith.constant 0 : i32
    %c0_i32_0 = arith.constant 0 : i32
    return %arg0, %c0_i32 : i32, i32
  }
  func.func @transform_1(%arg0: i32) -> (i32, i32) {
    %c0_i32 = arith.constant 0 : i32
    %c0_i32_0 = arith.constant 0 : i32
    %c0_i32_1 = arith.constant 0 : i32
    return %c0_i32, %c0_i32_0 : i32, i32
  }
  func.func @transform_2(%arg0: i32) -> (i32, i32) {
    %c0_i32 = arith.constant 0 : i32
    %c0_i32_0 = arith.constant 0 : i32
    %c0_i32_1 = arith.constant 0 : i32
    return %c0_i32, %c0_i32_0 : i32, i32
  }
  func.func @transform_3(%arg0: i32) -> (i32, i32) {
    %c0_i32 = arith.constant 0 : i32
    %c0_i32_0 = arith.constant 0 : i32
    return %arg0, %c0_i32 : i32, i32
  }
  func.func @transform_4(%arg0: i32) -> (i32, i32) {
    %c0_i32 = arith.constant 0 : i32
    %c0_i32_0 = arith.constant 0 : i32
    return %arg0, %c0_i32 : i32, i32
  }
}

</mosaic_0001>

<llo_original>
// kernel: tpu_custom_call.1
$region0: #{tpu_custom_call.1}
  #allocation0 [shape = 'u32[]', space=smem, size = 0x4, offset = 0x4, fixed_abs, tag = 'smem constant byte address 0x4 - core index']
  #allocation1 [shape = 'u32[144,128]{1,0:T(1,128)}', space=vmem, size = 0x12000, scoped, tag = 'internal scratch']
  %s0 = inlined_call_operand.vmem [shape: f32[64,128], index: 0, kind: input, shape index: {}]
  %s1 = inlined_call_operand.vmem [shape: f32[1,128], index: 1, kind: input, shape index: {}]
  %s2 = inlined_call_operand.vmem [shape: f32[1,128], index: 2, kind: input, shape index: {}]
  %s3 = inlined_call_operand.vmem [shape: f32[64,1], index: 3, kind: input, shape index: {}]
  %s4 = inlined_call_operand.hbm [shape: f32[64,128], index: 4, kind: output, shape index: {}]
  %s5 = sld [smem:[#allocation0]]
  $region49: #{tpu_custom_call.1} parent=0
    _
  %s7 = ssub.s32 1, %s5
  %s8 = scalar_select 0, %s7, %s5
  $region1: #{tpu_custom_call.1} parent=0
    #allocation2 [shape = 'u8[32768]{0}', space=vmem, size = 0x8000, scoped, tag = 'output window, operand 0']
    #allocation3 [shape = 's32[2]{0}', space=sflag, size = 0x8, scoped, tag = 'scoped memory for tpu_custom_call.1']
    %9 = vsyncpa [#allocation3], 0
    %s10 = scalar_lea.sflag [#allocation3], 1
    %11 = vsyncpa %s10, 0
    loop: start=0, step=1, limit=4
    $region2: #{tpu_custom_call.1} parent=1 // loop_pre_header
      _
    $region3: #{tpu_custom_call.1} parent=1 // loop_header
      %s13 = sphi 0, %s17
      %p14 = scmp.ge.s32.totalorder %s13, 4
      %s23 = sphi 0, %s25
      %s26 = sphi 0, %s23
      %s27 = sphi 0, %s26
      %s43 = sphi 0, %s27
      %s47 = sphi 0, %s47
      %s49 = sphi 0, %s47
      %s50 = sphi 0, %s49
      %s64 = sphi 0, %s50
      %s68 = sphi 0, %s68
      %s70 = sphi 0, %s68
      %s71 = sphi 0, %s70
      %s85 = sphi 0, %s71
      %s91 = sphi 0, %s93
      %s94 = sphi 0, %s91
      %s95 = sphi 0, %s94
      %s111 = sphi 0, %s95
      %s117 = sphi 0, %s119
      %s120 = sphi 0, %s117
      %s121 = sphi 0, %s120
      %s137 = sphi 0, %s121
    $region4: #{tpu_custom_call.1} parent=1 // loop_header_branch
      %16 = sbr.rel (%p14) target = $region8
    $region5: #{tpu_custom_call.1} parent=1 // loop_body
      %s18 = ssub.s32 %s13, 1
      %s19 = ssub.s32 %s13, 2
      %s20 = sadd.s32 %s13, 1
      %s21 = ssub.s32 %s13, %s20
      %p22 = scmp.eq.s32.totalorder %s21, 0
      %s24 = sadd.s32 %s23, 1
      %s25 = scalar_select %p22, %s23, %s24
      %p28 = pneg %p22
      %p29 = scmp.eq.s32.totalorder %s13, 1
      %p30 = por %p28, %p29
      %p31 = scmp.ne.s32.totalorder %s23, %s26
      %p32 = scmp.eq.s32.totalorder %s13, 0
      %p33 = por %p31, %p32
      %p34 = scmp.ne.s32.totalorder %s23, %s26
      %p35 = scmp.eq.s32.totalorder %s18, 1
      %p36 = por %p34, %p35
      %p37 = scmp.ne.s32.totalorder %s26, %s27
      %p38 = scmp.eq.s32.totalorder %s18, 0
      %p39 = por %p37, %p38
      %p40 = scmp.ne.s32.totalorder %s26, %s27
      %p41 = scmp.eq.s32.totalorder %s19, 1
      %p42 = por %p40, %p41
      %p44 = scmp.ne.s32.totalorder %s27, %s43
      %p45 = scmp.eq.s32.totalorder %s19, 0
      %p46 = por %p44, %p45
      %s48 = sadd.s32 %s47, 1
      %p51 = scmp.eq.s32.totalorder %s13, 1
      %p52 = scmp.ne.s32.totalorder %s47, %s49
      %p53 = scmp.eq.s32.totalorder %s13, 0
      %p54 = por %p52, %p53
      %p55 = scmp.ne.s32.totalorder %s47, %s49
      %p56 = scmp.eq.s32.totalorder %s18, 1
      %p57 = por %p55, %p56
      %p58 = scmp.ne.s32.totalorder %s49, %s50
      %p59 = scmp.eq.s32.totalorder %s18, 0
      %p60 = por %p58, %p59
      %p61 = scmp.ne.s32.totalorder %s49, %s50
      %p62 = scmp.eq.s32.totalorder %s19, 1
      %p63 = por %p61, %p62
      %p65 = scmp.ne.s32.totalorder %s50, %s64
      %p66 = scmp.eq.s32.totalorder %s19, 0
      %p67 = por %p65, %p66
      %s69 = sadd.s32 %s68, 1
      %p72 = scmp.eq.s32.totalorder %s13, 1
      %p73 = scmp.ne.s32.totalorder %s68, %s70
      %p74 = scmp.eq.s32.totalorder %s13, 0
      %p75 = por %p73, %p74
      %p76 = scmp.ne.s32.totalorder %s68, %s70
      %p77 = scmp.eq.s32.totalorder %s18, 1
      %p78 = por %p76, %p77
      %p79 = scmp.ne.s32.totalorder %s70, %s71
      %p80 = scmp.eq.s32.totalorder %s18, 0
      %p81 = por %p79, %p80
      %p82 = scmp.ne.s32.totalorder %s70, %s71
      %p83 = scmp.eq.s32.totalorder %s19, 1
      %p84 = por %p82, %p83
      %p86 = scmp.ne.s32.totalorder %s71, %s85
      %p87 = scmp.eq.s32.totalorder %s19, 0
      %p88 = por %p86, %p87
      %s89 = ssub.s32 %s13, %s20
      %p90 = scmp.eq.s32.totalorder %s89, 0
      %s92 = sadd.s32 %s91, 1
      %s93 = scalar_select %p90, %s91, %s92
      %p96 = pneg %p90
      %p97 = scmp.eq.s32.totalorder %s13, 1
      %p98 = por %p96, %p97
      %p99 = scmp.ne.s32.totalorder %s91, %s94
      %p100 = scmp.eq.s32.totalorder %s13, 0
      %p101 = por %p99, %p100
      %p102 = scmp.ne.s32.totalorder %s91, %s94
      %p103 = scmp.eq.s32.totalorder %s18, 1
      %p104 = por %p102, %p103
      %p105 = scmp.ne.s32.totalorder %s94, %s95
      %p106 = scmp.eq.s32.totalorder %s18, 0
      %p107 = por %p105, %p106
      %p108 = scmp.ne.s32.totalorder %s94, %s95
      %p109 = scmp.eq.s32.totalorder %s19, 1
      %p110 = por %p108, %p109
      %p112 = scmp.ne.s32.totalorder %s95, %s111
      %p113 = scmp.eq.s32.totalorder %s19, 0
      %p114 = por %p112, %p113
      %s115 = ssub.s32 %s13, %s20
      %p116 = scmp.eq.s32.totalorder %s115, 0
      %s118 = sadd.s32 %s117, 1
      %s119 = scalar_select %p116, %s117, %s118
      %p122 = pneg %p116
      %p123 = scmp.eq.s32.totalorder %s13, 1
      %p124 = por %p122, %p123
      %p125 = scmp.ne.s32.totalorder %s117, %s120
      %p126 = scmp.eq.s32.totalorder %s13, 0
      %p127 = por %p125, %p126
      %p128 = scmp.ne.s32.totalorder %s117, %s120
      %p129 = scmp.eq.s32.totalorder %s18, 1
      %p130 = por %p128, %p129
      %p131 = scmp.ne.s32.totalorder %s120, %s121
      %p132 = scmp.eq.s32.totalorder %s18, 0
      %p133 = por %p131, %p132
      %p134 = scmp.ne.s32.totalorder %s120, %s121
      %p135 = scmp.eq.s32.totalorder %s19, 1
      %p136 = por %p134, %p135
      %p138 = scmp.ne.s32.totalorder %s121, %s137
      %p139 = scmp.eq.s32.totalorder %s19, 0
      %p140 = por %p138, %p139
      %p141 = scmp.le.s32.totalorder 1, %s13
      %p142 = scmp.lt.s32.totalorder %s13, 3
      %p143 = pnand %p141, %p142
      %p144 = pneg %p143
      // Predicated region
      $region9: #{tpu_custom_call.1} parent=5 // pred_check
        _
      $region10: #{tpu_custom_call.1} parent=5 // pred_check_branch
        %146 = sbr.rel (%p143) target = $region12
      $region11: #{tpu_custom_call.1} parent=5 // pred_region
        %s147 = ssub.s32 %s13, 1
        // Predicated region
        $region13: #{tpu_custom_call.1} parent=11 // pred_check
          %p148 = pneg %p60
        $region14: #{tpu_custom_call.1} parent=11 // pred_check_branch
          %150 = sbr.rel (%p148) target = $region16
        $region15: #{tpu_custom_call.1} parent=11 // pred_region
          _
        $region16: #{tpu_custom_call.1} parent=11 // pred_fallthru
          _
        // Predicated region
        $region17: #{tpu_custom_call.1} parent=11 // pred_check
          %p151 = pneg %p81
        $region18: #{tpu_custom_call.1} parent=11 // pred_check_branch
          %153 = sbr.rel (%p151) target = $region20
        $region19: #{tpu_custom_call.1} parent=11 // pred_region
          _
        $region20: #{tpu_custom_call.1} parent=11 // pred_fallthru
          _
      $region12: #{tpu_custom_call.1} parent=5 // pred_fallthru
        _
      %p154 = scmp.lt.s32.totalorder %s13, 2
      // Predicated region
      $region21: #{tpu_custom_call.1} parent=5 // pred_check
        %p155 = pneg %p154
      $region22: #{tpu_custom_call.1} parent=5 // pred_check_branch
        %157 = sbr.rel (%p155) target = $region24
      $region23: #{tpu_custom_call.1} parent=5 // pred_region
        // Predicated region
        $region25: #{tpu_custom_call.1} parent=23 // pred_check
          %p158 = pneg %p33
        $region26: #{tpu_custom_call.1} parent=23 // pred_check_branch
          %160 = sbr.rel (%p158) target = $region28
        $region27: #{tpu_custom_call.1} parent=23 // pred_region
          %s161 = smul.u32 4, %s13
          %p162 = scmp.lt.s32.totalorder %s161, 7
          %s163 = scalar_select %p162, %s161, 7
          %s164 = smul.addr %s163, 8
          %s165 = scalar_lea.vmem %s0, %s164
          %s166 = smul.u32 4, %s13
        $region28: #{tpu_custom_call.1} parent=23 // pred_fallthru
          _
        // Predicated region
        $region29: #{tpu_custom_call.1} parent=23 // pred_check
          %p167 = pneg %p101
        $region30: #{tpu_custom_call.1} parent=23 // pred_check_branch
          %169 = sbr.rel (%p167) target = $region32
        $region31: #{tpu_custom_call.1} parent=23 // pred_region
          %s170 = smul.u32 4, %s13
          %p171 = scmp.lt.s32.totalorder %s170, 7
          %s172 = scalar_select %p171, %s170, 7
          %s173 = smul.addr %s172, 8
          %s174 = scalar_lea.vmem %s3, %s173
          %s175 = smul.u32 4, %s13
        $region32: #{tpu_custom_call.1} parent=23 // pred_fallthru
          _
      $region24: #{tpu_custom_call.1} parent=5 // pred_fallthru
        _
      %p176 = scmp.le.s32.totalorder 1, %s13
      %p177 = scmp.lt.s32.totalorder %s13, 3
      %p178 = pnand %p176, %p177
      %p179 = pneg %p178
      // Predicated region
      $region33: #{tpu_custom_call.1} parent=5 // pred_check
        _
      $region34: #{tpu_custom_call.1} parent=5 // pred_check_branch
        %181 = sbr.rel (%p178) target = $region36
      $region35: #{tpu_custom_call.1} parent=5 // pred_region
        %s182 = ssub.s32 %s13, 1
        %s183 = smul.u32 4, %s18
        %p184 = scmp.lt.s32.totalorder %s183, 7
        %s185 = scalar_select %p184, %s183, 7
        %s186 = smul.addr %s185, 8
        %s187 = scalar_lea.vmem %s0, %s186
        %p188 = pneg %p39
        %p189 = pneg %p36
        %p190 = pneg %p60
        %p191 = pneg %p57
        %p192 = pneg %p81
        %p193 = pneg %p78
        %s194 = smul.u32 4, %s18
        %p195 = scmp.lt.s32.totalorder %s194, 7
        %s196 = scalar_select %p195, %s194, 7
        %s197 = smul.addr %s196, 8
        %s198 = scalar_lea.vmem %s3, %s197
        %p199 = pneg %p107
        %p200 = pneg %p104
        %p201 = pneg %p133
        %p202 = pneg %p130
        %s203 = sand.u32 %s120, 1
        %s204 = scalar_lea.sflag [#allocation3], %s203
        %s205 = sand.u32 %s120, 1
        %s206 = smul.addr %s205, 32
        %s207 = scalar_lea.vmem [#allocation2], %s206
        %s208 = smul.u32 4, %s18
        %p209 = scmp.lt.s32.totalorder %s208, 7
        %s210 = scalar_select %p209, %s208, 7
        %s211 = smul.addr %s210, 8
        %s212 = scalar_lea.vmem %s0, %s211
        %s213 = smul.u32 4, %s18
        %s214 = smul.u32 4, %s18
        %p215 = scmp.lt.s32.totalorder %s214, 7
        %s216 = scalar_select %p215, %s214, 7
        %s217 = smul.addr %s216, 8
        %s218 = scalar_lea.vmem %s3, %s217
        %s219 = smul.u32 4, %s18
        %s220 = smul.u32 4, %s18
        %v221 = vld [vmem:[%s212] sm:$0xff]
        %v222 = vld [vmem:[%s212 + $0x8] sm:$0xff]
        %v223 = vld [vmem:[%s212 + $0x10] sm:$0xff]
        %v224 = vld [vmem:[%s212 + $0x18] sm:$0xff]
        %225 = vadd.xlane.f32.xlu0 %v221
        %v226 = vpop.xlane.xlu0 %225
        %227 = vadd.xlane.f32.xlu0 %v222
        %v228 = vpop.xlane.xlu0 %227
        %229 = vadd.xlane.f32.xlu0 %v223
        %v230 = vpop.xlane.xlu0 %229
        %231 = vadd.xlane.f32.xlu0 %v224
        %v232 = vpop.xlane.xlu0 %231
        %v233 = vrcp.pop 128.0
        %v234 = vmul.f32 %v226, %v233
        %v235 = vmul.f32 %v228, %v233
        %v236 = vmul.f32 %v230, %v233
        %v237 = vmul.f32 %v232, %v233
        %v238 = vsub.f32 %v221, %v234
        %v239 = vsub.f32 %v222, %v235
        %v240 = vsub.f32 %v223, %v236
        %v241 = vsub.f32 %v224, %v237
        %v242 = vmul.f32 %v238, %v238
        %v243 = vmul.f32 %v239, %v239
        %v244 = vmul.f32 %v240, %v240
        %v245 = vmul.f32 %v241, %v241
        %246 = vadd.xlane.f32.xlu0 %v242
        %v247 = vpop.xlane.xlu0 %246
        %248 = vadd.xlane.f32.xlu0 %v243
        %v249 = vpop.xlane.xlu0 %248
        %250 = vadd.xlane.f32.xlu0 %v244
        %v251 = vpop.xlane.xlu0 %250
        %252 = vadd.xlane.f32.xlu0 %v245
        %v253 = vpop.xlane.xlu0 %252
        %v254 = vrcp.pop 127.0
        %v255 = vmul.f32 %v247, %v254
        %v256 = vmul.f32 %v249, %v254
        %v257 = vmul.f32 %v251, %v254
        %v258 = vmul.f32 %v253, %v254
        %v259 = vadd.f32 %v255, 1e-06
        %v260 = vadd.f32 %v256, 1e-06
        %v261 = vadd.f32 %v257, 1e-06
        %v262 = vadd.f32 %v258, 1e-06
        %v263 = vrsqrt.pop %v259
        %v264 = vmul.f32 %v259, %v263
        %vm265 = vcmp.eq.f32.partialorder %v259, inf
        %v266 = vsel %vm265, %v259, %v264
        %vm267 = vcmp.eq.f32.partialorder %v259, 0.0
        %v268 = vand.u32 %v259, 2147483648
        %v269 = vsel %vm267, %v268, %v266
        %v270 = vrsqrt.pop %v260
        %v271 = vmul.f32 %v260, %v270
        %vm272 = vcmp.eq.f32.partialorder %v260, inf
        %v273 = vsel %vm272, %v260, %v271
        %vm274 = vcmp.eq.f32.partialorder %v260, 0.0
        %v275 = vand.u32 %v260, 2147483648
        %v276 = vsel %vm274, %v275, %v273
        %v277 = vrsqrt.pop %v261
        %v278 = vmul.f32 %v261, %v277
        %vm279 = vcmp.eq.f32.partialorder %v261, inf
        %v280 = vsel %vm279, %v261, %v278
        %vm281 = vcmp.eq.f32.partialorder %v261, 0.0
        %v282 = vand.u32 %v261, 2147483648
        %v283 = vsel %vm281, %v282, %v280
        %v284 = vrsqrt.pop %v262
        %v285 = vmul.f32 %v262, %v284
        %vm286 = vcmp.eq.f32.partialorder %v262, inf
        %v287 = vsel %vm286, %v262, %v285
        %vm288 = vcmp.eq.f32.partialorder %v262, 0.0
        %v289 = vand.u32 %v262, 2147483648
        %v290 = vsel %vm288, %v289, %v287
        %v291 = vld [vmem:[%s218] sm:$0xff]
        %v292 = vld [vmem:[%s218 + $0x8] sm:$0xff]
        %v293 = vld [vmem:[%s218 + $0x10] sm:$0xff]
        %v294 = vld [vmem:[%s218 + $0x18] sm:$0xff]
        %v295 = vadd.f32 %v269, 1e-06
        %v296 = vadd.f32 %v276, 1e-06
        %v297 = vadd.f32 %v283, 1e-06
        %v298 = vadd.f32 %v290, 1e-06
        %v299 = vrcp.pop %v295
        %v300 = vmul.f32 %v291, %v299
        %v301 = vrcp.pop %v296
        %v302 = vmul.f32 %v292, %v301
        %v303 = vrcp.pop %v297
        %v304 = vmul.f32 %v293, %v303
        %v305 = vrcp.pop %v298
        %v306 = vmul.f32 %v294, %v305
        %v307 = vld [vmem:[%s1] sm:$0x1]
        %v308 = vld [vmem:[%s2] sm:$0x1]
        %310 = vset.pattern.permute.xlu0 0
        %311 = vperm.xlu0 %310, %v300
        %v312 = vpop.permute.xlu0 %311
        %315 = vset.pattern.permute.xlu0 0
        %316 = vperm.xlu0 %315, %v302
        %v317 = vpop.permute.xlu0 %316
        %320 = vset.pattern.permute.xlu0 0
        %321 = vperm.xlu0 %320, %v304
        %v322 = vpop.permute.xlu0 %321
        %325 = vset.pattern.permute.xlu0 0
        %326 = vperm.xlu0 %325, %v306
        %v327 = vpop.permute.xlu0 %326
        %v329 = vmul.f32 %v238, %v312
        %v330 = vmul.f32 %v239, %v317
        %v331 = vmul.f32 %v240, %v322
        %v332 = vmul.f32 %v241, %v327
        %v334 = vlaneseq
        %v335 = vshrl.u32 %v334, 7
        %v336 = vsub.s32 0, %v335
        %v337 = vrot.slane %v307, %v336
        %v339 = vmul.f32 %v337, %v329
        %v340 = vmul.f32 %v337, %v330
        %v341 = vmul.f32 %v337, %v331
        %v342 = vmul.f32 %v337, %v332
        %v344 = vlaneseq
        %v345 = vshrl.u32 %v344, 7
        %v346 = vsub.s32 0, %v345
        %v347 = vrot.slane %v308, %v346
        %350 = vset.pattern.permute.xlu0 0
        %351 = vperm.xlu0 %350, %v291
        %v352 = vpop.permute.xlu0 %351
        %355 = vset.pattern.permute.xlu0 0
        %356 = vperm.xlu0 %355, %v292
        %v357 = vpop.permute.xlu0 %356
        %360 = vset.pattern.permute.xlu0 0
        %361 = vperm.xlu0 %360, %v293
        %v362 = vpop.permute.xlu0 %361
        %365 = vset.pattern.permute.xlu0 0
        %366 = vperm.xlu0 %365, %v294
        %v367 = vpop.permute.xlu0 %366
        %v369 = vmul.f32 %v347, %v352
        %v370 = vmul.f32 %v347, %v357
        %v371 = vmul.f32 %v347, %v362
        %v372 = vmul.f32 %v347, %v367
        %v373 = vadd.f32 %v339, %v369
        %v374 = vadd.f32 %v340, %v370
        %v375 = vadd.f32 %v341, %v371
        %v376 = vadd.f32 %v342, %v372
        %377 = vst [vmem:[%s207] sm:$0xff] %v373
        %378 = vst [vmem:[%s207 + $0x8] sm:$0xff] %v374
        %379 = vst [vmem:[%s207 + $0x10] sm:$0xff] %v375
        %380 = vst [vmem:[%s207 + $0x18] sm:$0xff] %v376
        %s381 = sand.u32 %s120, 1
        %s382 = scalar_lea.sflag [#allocation3], %s381
        %s383 = sand.u32 %s120, 1
        %s384 = smul.addr %s383, 32
        %s385 = scalar_lea.vmem [#allocation2], %s384
        // Predicated region
        $region37: #{tpu_custom_call.1} parent=35 // pred_check
          %p386 = pneg %p130
        $region38: #{tpu_custom_call.1} parent=35 // pred_check_branch
          %388 = sbr.rel (%p386) target = $region40
        $region39: #{tpu_custom_call.1} parent=35 // pred_region
          %s389 = smul.u32 4, %s18
          %s391 = ssub.s32 512, 512
          %392 = vsyncadd %s382, %s391
          %s393 = smul.addr %s389, 128
          %s394 = scalar_lea.hbm %s4, %s393
          %s395 = sshll.u32 %s385, 4
          %s396 = int_to_ptr.vmem [resolvable:$true] %s395
          %401 = dma.vmem_to_hbm [thread:$0]  %s396, 512, %s394, %s382, 128, 128, 8
        $region40: #{tpu_custom_call.1} parent=35 // pred_fallthru
          _
      $region36: #{tpu_custom_call.1} parent=5 // pred_fallthru
        _
      %p402 = scmp.le.s32.totalorder 2, %s13
      // Predicated region
      $region41: #{tpu_custom_call.1} parent=5 // pred_check
        %p403 = pneg %p402
      $region42: #{tpu_custom_call.1} parent=5 // pred_check_branch
        %405 = sbr.rel (%p403) target = $region44
      $region43: #{tpu_custom_call.1} parent=5 // pred_region
        %s406 = ssub.s32 %s13, 2
        // Predicated region
        $region45: #{tpu_custom_call.1} parent=43 // pred_check
          %p407 = pneg %p136
        $region46: #{tpu_custom_call.1} parent=43 // pred_check_branch
          %409 = sbr.rel (%p407) target = $region48
        $region47: #{tpu_custom_call.1} parent=43 // pred_region
          %s410 = sand.u32 %s121, 1
          %s411 = scalar_lea.sflag [#allocation3], %s410
          %s412 = sand.u32 %s121, 1
          %s413 = smul.addr %s412, 32
          %s414 = scalar_lea.vmem [#allocation2], %s413
          %415 = dma.done %s411, 512
        $region48: #{tpu_custom_call.1} parent=43 // pred_fallthru
          _
      $region44: #{tpu_custom_call.1} parent=5 // pred_fallthru
        _
    $region6: #{tpu_custom_call.1} parent=1 // loop_footer
      %s17 = sadd.s32 1, %s13
    $region7: #{tpu_custom_call.1} parent=1 // loop_footer_branch
      %12 = sbr.rel target = $region3
    $region8: #{tpu_custom_call.1} parent=1 // loop_exit
      _
    %416 = vsyncpa [#allocation3], 1
    %s417 = scalar_lea.sflag [#allocation3], 1
    %418 = vsyncpa %s417, 1

</llo_original>
